<compile_context>
chip_gen: v7x
topology: tpu7x:2x2x1
jax: 0.10.0
libtpu: 0.0.40
codegen_flags: <defaults>
</compile_context>

<pallas_src>
import functools

import jax
import jax.numpy as jnp
import numpy as np
from jax.experimental import pallas as pl
from jax.experimental.pallas import tpu as pltpu


def _round_up(x, m):
    return (x + m - 1) // m * m


def _tree_lstm_kernel(nh_ref, nc_ref, ublk_ref, fin_ref, iou_ref, hc_ref, *, k, h_size):
    nh = nh_ref[...].astype(jnp.float32)    # (TN, K*H)   lane-dense children (h)
    nc = nc_ref[...].astype(jnp.float32)    # (TN, K*H)   lane-dense children (c)
    ublk = ublk_ref[...]                    # (K*H, K*H)  block-diagonal forget weights
    fin = fin_ref[...].astype(jnp.float32)  # (TN, H)
    iou = iou_ref[...].astype(jnp.float32)  # (TN, 3H)

    # Forget gate for all children in one MXU pass:
    #   (nh_flat @ block_diag(U_f))[: , k*H:(k+1)*H] == nh[:, k, :] @ U_f[k]
    fg = jnp.dot(nh, ublk, preferred_element_type=jnp.float32)

    # f_input.repeat((1, K)) -> tile along lanes (static K copies, once per tile).
    fin_tiled = jnp.concatenate([fin] * k, axis=-1)
    f = jax.nn.sigmoid(fg + fin_tiled)       # (TN, K*H) full-width VPU/EUP

    # c_aggr = sum_k f_k * c_k  via static lane slices (no cross-lane reductions).
    fc = f * nc                              # (TN, K*H)
    c_aggr = fc[:, 0:h_size]
    for kk in range(1, k):
        c_aggr = c_aggr + fc[:, kk * h_size:(kk + 1) * h_size]

    # apply_node_func (iou_aggr absent in the base class; torch.chunk order i|o|u).
    i = jax.nn.sigmoid(iou[:, 0 * h_size:1 * h_size])
    o = jax.nn.sigmoid(iou[:, 1 * h_size:2 * h_size])
    u = jnp.tanh(iou[:, 2 * h_size:3 * h_size])

    c = i * u + c_aggr
    h = o * jnp.tanh(c)

    # Single merged output slab [h | c] -> one store stream per tile.
    hc_ref[...] = jnp.concatenate([h, c], axis=-1).astype(hc_ref.dtype)


@functools.partial(jax.jit, static_argnames=("max_output_degree", "tile_n"))
def generic_tree_lstm_cell(neighbour_h, neighbour_c, f_input, iou_input, u_f_stacked,
                           *, max_output_degree, tile_n=1024):
    """neighbour_h/c: (N, K_actual, H); f_input: (N, H); iou_input: (N, 3H);
    u_f_stacked: (max_output_degree, H, H). Returns (h, c), each (N, H) float32."""
    n_nodes, k_actual, h_size = neighbour_h.shape
    assert 1 <= k_actual <= max_output_degree
    k = k_actual  # missing children are bottom_h/bottom_c == 0 -> contribute exactly 0; skip padding.

    # Block-diagonal forget weight: one (K*H, K*H) matmul instead of K tiny padded ones.
    u_blocks = [u_f_stacked[kk] for kk in range(k)]
    u_blk = jax.scipy.linalg.block_diag(*u_blocks) if k > 1 else u_blocks[0]
    u_blk = u_blk.astype(jnp.float32)

    # Lane-dense child layout: fold K into the lane dimension (contiguous reshape, free).
    nh = neighbour_h.reshape(n_nodes, k * h_size)
    nc = neighbour_c.reshape(n_nodes, k * h_size)

    # Node tiling: big tiles to amortize ~0.35 us/step overhead; keep sublane multiple of 8.
    tile_eff = min(tile_n, _round_up(n_nodes, 8))
    tile_eff = _round_up(tile_eff, 8)
    n_pad = _round_up(n_nodes, tile_eff)
    if n_pad > n_nodes:
        pad = ((0, n_pad - n_nodes), (0, 0))
        nh = jnp.pad(nh, pad)
        nc = jnp.pad(nc, pad)
        f_input = jnp.pad(f_input, pad)
        iou_input = jnp.pad(iou_input, pad)

    grid = (n_pad // tile_eff,)
    kernel = functools.partial(_tree_lstm_kernel, k=k, h_size=h_size)

    # Working set: ~1.5 KB/node double-buffered + 2x (K*H)^2 f32 for U -> a few MiB at
    # tile_n=1024, safely under the default scoped VMEM on v5e/v6e/v7x (no limit override needed).
    hc = pl.pallas_call(
        kernel,
        out_shape=jax.ShapeDtypeStruct((n_pad, 2 * h_size), jnp.float32),
        grid_spec=pltpu.PrefetchScalarGridSpec(
            num_scalar_prefetch=0,
            grid=grid,
            in_specs=[
                pl.BlockSpec((tile_eff, k * h_size), lambda i: (i, 0)),        # neighbour_h (lane-dense)
                pl.BlockSpec((tile_eff, k * h_size), lambda i: (i, 0)),        # neighbour_c (lane-dense)
                pl.BlockSpec((k * h_size, k * h_size), lambda i: (0, 0)),      # block-diag U_f (grid-invariant)
                pl.BlockSpec((tile_eff, h_size), lambda i: (i, 0)),            # f_input
                pl.BlockSpec((tile_eff, 3 * h_size), lambda i: (i, 0)),        # iou_input
            ],
            out_specs=pl.BlockSpec((tile_eff, 2 * h_size), lambda i: (i, 0)),  # [h | c]
        ),
        compiler_params=pltpu.CompilerParams(dimension_semantics=("parallel",)),
    )(nh, nc, u_blk, f_input, iou_input)

    h = hc[:n_nodes, :h_size]
    c = hc[:n_nodes, h_size:]
    return h, c


def _reference(neighbour_h, neighbour_c, f_input, iou_input, u_f_stacked, max_output_degree):
    """Pure-JAX mirror of reduce_func + apply_node_func (with bottom padding) for verification."""
    n_nodes, k_actual, h_size = neighbour_h.shape
    n_missing = max_output_degree - k_actual
    if n_missing > 0:
        pad = ((0, 0), (0, n_missing), (0, 0))
        neighbour_h = jnp.pad(neighbour_h, pad)
        neighbour_c = jnp.pad(neighbour_c, pad)
    fg = jnp.einsum("nkh,khd->nkd", neighbour_h, u_f_stacked,
                    preferred_element_type=jnp.float32)
    f = jax.nn.sigmoid(fg + f_input[:, None, :])
    c_aggr = jnp.sum(f * neighbour_c, axis=1)
    i, o, u = jnp.split(iou_input, 3, axis=1)
    i, o, u = jax.nn.sigmoid(i), jax.nn.sigmoid(o), jnp.tanh(u)
    c = i * u + c_aggr
    h = o * jnp.tanh(c)
    return h, c


if __name__ == "__main__":
    h_size = 32
    max_output_degree = 4        # K
    n_children_present = 3       # < K to exercise check_missing_children semantics
    n_nodes = 8
    pos_stationarity = False

    key = jax.random.PRNGKey(0)
    k_uf, k_nh, k_nc, k_fi, k_iou = jax.random.split(key, 5)

    # Deterministic parameter init (th.randn equivalents).
    if pos_stationarity:
        u_f = jax.random.normal(k_uf, (h_size, h_size), dtype=jnp.float32)
        u_f_stacked = jnp.broadcast_to(u_f, (max_output_degree, h_size, h_size))
    else:
        u_f_stacked = jax.random.normal(
            k_uf, (max_output_degree, h_size, h_size), dtype=jnp.float32)

    # Example "mailbox" inputs (children states) and node inputs.
    neighbour_h = jax.random.normal(k_nh, (n_nodes, n_children_present, h_size), jnp.float32)
    neighbour_c = jax.random.normal(k_nc, (n_nodes, n_children_present, h_size), jnp.float32)
    f_input = jax.random.normal(k_fi, (n_nodes, h_size), jnp.float32)
    iou_input = jax.random.normal(k_iou, (n_nodes, 3 * h_size), jnp.float32)

    h_out, c_out = generic_tree_lstm_cell(
        neighbour_h, neighbour_c, f_input, iou_input, u_f_stacked,
        max_output_degree=max_output_degree)
    jax.block_until_ready((h_out, c_out))

    h_ref, c_ref = _reference(
        neighbour_h, neighbour_c, f_input, iou_input, u_f_stacked, max_output_degree)
    np.testing.assert_allclose(np.asarray(h_out), np.asarray(h_ref), rtol=1e-4, atol=1e-4)
    np.testing.assert_allclose(np.asarray(c_out), np.asarray(c_ref), rtol=1e-4, atol=1e-4)

    print("KERNEL_OK")
</pallas_src>

<mosaic_0001>
module attributes {stable_mosaic.version = 11 : i64} {
  func.func @_tree_lstm_kernel(%arg0: i32, %arg1: memref<8x96xf32, #tpu.memory_space<vmem>>, %arg2: memref<8x96xf32, #tpu.memory_space<vmem>>, %arg3: memref<96x96xf32, #tpu.memory_space<vmem>>, %arg4: memref<8x32xf32, #tpu.memory_space<vmem>>, %arg5: memref<8x96xf32, #tpu.memory_space<vmem>>, %arg6: memref<8x64xf32, #tpu.memory_space<vmem>>) attributes {dimension_semantics = [#tpu.dimension_semantics<parallel>], iteration_bounds = array<i64: 1>, scalar_prefetch = 0 : i64, scratch_operands = 0 : i64, tpu.core_type = #tpu.core_type<tc>, window_params = [{transform_indices = @transform_0, window_bounds = array<i64: 8, 96>}, {transform_indices = @transform_1, window_bounds = array<i64: 8, 96>}, {pipeline_mode = #tpu.pipeline_mode<synchronous>, transform_indices = @transform_2, window_bounds = array<i64: 96, 96>}, {transform_indices = @transform_3, window_bounds = array<i64: 8, 32>}, {transform_indices = @transform_4, window_bounds = array<i64: 8, 96>}, {transform_indices = @transform_5, window_bounds = array<i64: 8, 64>}]} {
    %c0 = arith.constant 0 : index
    %c0_0 = arith.constant 0 : index
    %0 = vector.load %arg1[%c0, %c0_0] : memref<8x96xf32, #tpu.memory_space<vmem>>, vector<8x96xf32>
    %c0_1 = arith.constant 0 : index
    %c0_2 = arith.constant 0 : index
    %1 = vector.load %arg2[%c0_1, %c0_2] : memref<8x96xf32, #tpu.memory_space<vmem>>, vector<8x96xf32>
    %c0_3 = arith.constant 0 : index
    %c0_4 = arith.constant 0 : index
    %2 = vector.load %arg3[%c0_3, %c0_4] : memref<96x96xf32, #tpu.memory_space<vmem>>, vector<96x96xf32>
    %c0_5 = arith.constant 0 : index
    %c0_6 = arith.constant 0 : index
    %3 = vector.load %arg4[%c0_5, %c0_6] : memref<8x32xf32, #tpu.memory_space<vmem>>, vector<8x32xf32>
    %c0_7 = arith.constant 0 : index
    %c0_8 = arith.constant 0 : index
    %4 = vector.load %arg5[%c0_7, %c0_8] : memref<8x96xf32, #tpu.memory_space<vmem>>, vector<8x96xf32>
    %cst = arith.constant dense<0.000000e+00> : vector<8x96xf32>
    %5 = tpu.matmul %0, %2, %cst {dimension_numbers = #tpu.dot_dimension_numbers<[1], [0], [0], [1], [0, 0, 1, 1], [], []>} : vector<8x96xf32>, vector<96x96xf32>, vector<8x96xf32> -> vector<8x96xf32>
    %6 = tpu.concatenate %3, %3, %3 in 1 : vector<8x32xf32>, vector<8x32xf32>, vector<8x32xf32> -> vector<8x96xf32>
    %7 = arith.addf %5, %6 : vector<8x96xf32>
    %8 = arith.negf %7 : vector<8x96xf32>
    %9 = math.exp %8 : vector<8x96xf32>
    %cst_9 = arith.constant 1.000000e+00 : f32
    %10 = vector.broadcast %cst_9 : f32 to vector<8x96xf32>
    %11 = arith.addf %10, %9 : vector<8x96xf32>
    %12 = arith.divf %10, %11 : vector<8x96xf32>
    %13 = arith.mulf %12, %1 : vector<8x96xf32>
    %14 = vector.extract_strided_slice %13 {offsets = [0, 0], sizes = [8, 32], strides = [1, 1]} : vector<8x96xf32> to vector<8x32xf32>
    %15 = vector.extract_strided_slice %13 {offsets = [0, 32], sizes = [8, 32], strides = [1, 1]} : vector<8x96xf32> to vector<8x32xf32>
    %16 = arith.addf %14, %15 : vector<8x32xf32>
    %17 = vector.extract_strided_slice %13 {offsets = [0, 64], sizes = [8, 32], strides = [1, 1]} : vector<8x96xf32> to vector<8x32xf32>
    %18 = arith.addf %16, %17 : vector<8x32xf32>
    %19 = vector.extract_strided_slice %4 {offsets = [0, 0], sizes = [8, 32], strides = [1, 1]} : vector<8x96xf32> to vector<8x32xf32>
    %20 = arith.negf %19 : vector<8x32xf32>
    %21 = math.exp %20 : vector<8x32xf32>
    %cst_10 = arith.constant 1.000000e+00 : f32
    %22 = vector.broadcast %cst_10 : f32 to vector<8x32xf32>
    %23 = arith.addf %22, %21 : vector<8x32xf32>
    %24 = arith.divf %22, %23 : vector<8x32xf32>
    %25 = vector.extract_strided_slice %4 {offsets = [0, 32], sizes = [8, 32], strides = [1, 1]} : vector<8x96xf32> to vector<8x32xf32>
    %26 = arith.negf %25 : vector<8x32xf32>
    %27 = math.exp %26 : vector<8x32xf32>
    %cst_11 = arith.constant 1.000000e+00 : f32
    %28 = vector.broadcast %cst_11 : f32 to vector<8x32xf32>
    %29 = arith.addf %28, %27 : vector<8x32xf32>
    %30 = arith.divf %28, %29 : vector<8x32xf32>
    %31 = vector.extract_strided_slice %4 {offsets = [0, 64], sizes = [8, 32], strides = [1, 1]} : vector<8x96xf32> to vector<8x32xf32>
    %32 = math.tanh %31 : vector<8x32xf32>
    %33 = arith.mulf %24, %32 : vector<8x32xf32>
    %34 = arith.addf %33, %18 : vector<8x32xf32>
    %35 = math.tanh %34 : vector<8x32xf32>
    %36 = arith.mulf %30, %35 : vector<8x32xf32>
    %37 = tpu.concatenate %36, %34 in 1 : vector<8x32xf32>, vector<8x32xf32> -> vector<8x64xf32>
    %c0_12 = arith.constant 0 : index
    %c0_13 = arith.constant 0 : index
    %38 = vector.load %arg6[%c0_12, %c0_13] : memref<8x64xf32, #tpu.memory_space<vmem>>, vector<8x64xf32>
    tpu.vector_store %arg6[%c0_12, %c0_13], %37 {strides = array<i32>} : memref<8x64xf32, #tpu.memory_space<vmem>>, vector<8x64xf32>,
    return
  }
  func.func @transform_0(%arg0: i32) -> (i32, i32) {
    %c0_i32 = arith.constant 0 : i32
    %c0_i32_0 = arith.constant 0 : i32
    return %arg0, %c0_i32 : i32, i32
  }
  func.func @transform_1(%arg0: i32) -> (i32, i32) {
    %c0_i32 = arith.constant 0 : i32
    %c0_i32_0 = arith.constant 0 : i32
    return %arg0, %c0_i32 : i32, i32
  }
  func.func @transform_2(%arg0: i32) -> (i32, i32) {
    %c0_i32 = arith.constant 0 : i32
    %c0_i32_0 = arith.constant 0 : i32
    %c0_i32_1 = arith.constant 0 : i32
    return %c0_i32, %c0_i32_0 : i32, i32
  }
  func.func @transform_3(%arg0: i32) -> (i32, i32) {
    %c0_i32 = arith.constant 0 : i32
    %c0_i32_0 = arith.constant 0 : i32
    return %arg0, %c0_i32 : i32, i32
  }
  func.func @transform_4(%arg0: i32) -> (i32, i32) {
    %c0_i32 = arith.constant 0 : i32
    %c0_i32_0 = arith.constant 0 : i32
    return %arg0, %c0_i32 : i32, i32
  }
  func.func @transform_5(%arg0: i32) -> (i32, i32) {
    %c0_i32 = arith.constant 0 : i32
    %c0_i32_0 = arith.constant 0 : i32
    return %arg0, %c0_i32 : i32, i32
  }
}

</mosaic_0001>

<llo_original>
// kernel: generic_tree_lstm_cell.1
$region0: #{generic_tree_lstm_cell.1}
  #allocation0 [shape = 'u32[]', space=smem, size = 0x4, offset = 0x4, fixed_abs, tag = 'smem constant byte address 0x4 - core index']
  #allocation1 [shape = 'u32[144,128]{1,0:T(1,128)}', space=vmem, size = 0x12000, scoped, tag = 'internal scratch']
  %s0 = inlined_call_operand.vmem [shape: f32[8,96], index: 0, kind: input, shape index: {}]
  %s1 = inlined_call_operand.vmem [shape: f32[8,96], index: 1, kind: input, shape index: {}]
  %s2 = inlined_call_operand.vmem [shape: f32[96,96], index: 2, kind: input, shape index: {}]
  %s3 = inlined_call_operand.vmem [shape: f32[8,32], index: 3, kind: input, shape index: {}]
  %s4 = inlined_call_operand.vmem [shape: f32[8,96], index: 4, kind: input, shape index: {}]
  %s5 = inlined_call_operand.vmem [shape: f32[8,64], index: 5, kind: output, shape index: {}]
  %s6 = sld [smem:[#allocation0]]
  $region30: #{generic_tree_lstm_cell.1} parent=0
    _
  %s8 = ssub.s32 1, %s6
  %s9 = scalar_select 0, %s8, %s6
  // Predicated region
  $region2: #{generic_tree_lstm_cell.1} parent=0 // pred_check
    _
  $region3: #{generic_tree_lstm_cell.1} parent=0 // pred_check_branch
    %11 = sbr.rel (0) target = $region5
  $region4: #{generic_tree_lstm_cell.1} parent=0 // pred_region
    _
  $region5: #{generic_tree_lstm_cell.1} parent=0 // pred_fallthru
    _
  // Predicated region
  $region6: #{generic_tree_lstm_cell.1} parent=0 // pred_check
    _
  $region7: #{generic_tree_lstm_cell.1} parent=0 // pred_check_branch
    %13 = sbr.rel (0) target = $region9
  $region8: #{generic_tree_lstm_cell.1} parent=0 // pred_region
    _
  $region9: #{generic_tree_lstm_cell.1} parent=0 // pred_fallthru
    _
  // Predicated region
  $region10: #{generic_tree_lstm_cell.1} parent=0 // pred_check
    _
  $region11: #{generic_tree_lstm_cell.1} parent=0 // pred_check_branch
    %15 = sbr.rel (0) target = $region13
  $region12: #{generic_tree_lstm_cell.1} parent=0 // pred_region
    _
  $region13: #{generic_tree_lstm_cell.1} parent=0 // pred_fallthru
    _
  // Predicated region
  $region14: #{generic_tree_lstm_cell.1} parent=0 // pred_check
    _
  $region15: #{generic_tree_lstm_cell.1} parent=0 // pred_check_branch
    %17 = sbr.rel (0) target = $region17
  $region16: #{generic_tree_lstm_cell.1} parent=0 // pred_region
    _
  $region17: #{generic_tree_lstm_cell.1} parent=0 // pred_fallthru
    _
  // Predicated region
  $region18: #{generic_tree_lstm_cell.1} parent=0 // pred_check
    _
  $region19: #{generic_tree_lstm_cell.1} parent=0 // pred_check_branch
    %19 = sbr.rel (0) target = $region21
  $region20: #{generic_tree_lstm_cell.1} parent=0 // pred_region
    _
  $region21: #{generic_tree_lstm_cell.1} parent=0 // pred_fallthru
    _
  %v20 = vld [vmem:[%s0] sm:$0xff]
  %v21 = vld [vmem:[%s1] sm:$0xff]
  %v22 = vld [vmem:[%s2] sm:$0xff]
  %v23 = vld [vmem:[%s2 + $0x8] sm:$0xff]
  %v24 = vld [vmem:[%s2 + $0x10] sm:$0xff]
  %v25 = vld [vmem:[%s2 + $0x18] sm:$0xff]
  %v26 = vld [vmem:[%s2 + $0x20] sm:$0xff]
  %v27 = vld [vmem:[%s2 + $0x28] sm:$0xff]
  %v28 = vld [vmem:[%s2 + $0x30] sm:$0xff]
  %v29 = vld [vmem:[%s2 + $0x38] sm:$0xff]
  %v30 = vld [vmem:[%s2 + $0x40] sm:$0xff]
  %v31 = vld [vmem:[%s2 + $0x48] sm:$0xff]
  %v32 = vld [vmem:[%s2 + $0x50] sm:$0xff]
  %v33 = vld [vmem:[%s2 + $0x58] sm:$0xff]
  %v34 = vld [vmem:[%s3] sm:$0xff]
  %v35 = vld [vmem:[%s4] sm:$0xff]
  %37 = vrot.lane.b32.xlu0 %v34, 32
  %v38 = vpop.permute.xlu0 %37
  %40 = vrot.lane.b32.xlu0 %v34, 64
  %v41 = vpop.permute.xlu0 %40
  %vm43 = vcmask 261120
  %v44 = vsel %vm43, %v34, %v38
  %vm45 = vcmask 523264
  %v46 = vsel %vm45, %v44, %v41
  %vm47 = vcmask 785408
  %v49 = vsel %vm47, %v20, 0
  %51 = vmatprep.subr.mxu0 0.0
  %52 = vmatpush1.msra.mxu0 %v22
  %53 = vmatprep.subr.mxu0 0.0
  %54 = vmatpush1.msra.mxu0 %v23
  %55 = vmatprep.subr.mxu0 0.0
  %56 = vmatpush1.msra.mxu0 %v24
  %57 = vmatprep.subr.mxu0 0.0
  %58 = vmatpush1.msra.mxu0 %v25
  %59 = vmatprep.subr.mxu0 0.0
  %60 = vmatpush1.msra.mxu0 %v26
  %61 = vmatprep.subr.mxu0 0.0
  %62 = vmatpush1.msra.mxu0 %v27
  %63 = vmatprep.subr.mxu0 0.0
  %64 = vmatpush1.msra.mxu0 %v28
  %65 = vmatprep.subr.mxu0 0.0
  %66 = vmatpush1.msra.mxu0 %v29
  %67 = vmatprep.subr.mxu0 0.0
  %68 = vmatpush1.msra.mxu0 %v30
  %69 = vmatprep.subr.mxu0 0.0
  %70 = vmatpush1.msra.mxu0 %v31
  %71 = vmatprep.subr.mxu0 0.0
  %72 = vmatpush1.msra.mxu0 %v32
  %73 = vmatprep.subr.mxu0 0.0
  %74 = vmatpush1.msra.mxu0 %v33
  %75 = vmatprep.subr.mxu0 0.0
  %76 = vmatpush1.msra.mxu0 0.0
  %77 = vmatprep.subr.mxu0 0.0
  %78 = vmatpush1.msra.mxu0 0.0
  %79 = vmatprep.subr.mxu0 0.0
  %80 = vmatpush1.msra.mxu0 0.0
  %81 = vmatprep.subr.mxu0 0.0
  %82 = vmatpush1.msra.mxu0 0.0
  %83 = vmatprep.subr.mxu0 0.0
  %84 = vmatpush1.msra.mxu0 0.0
  %85 = vmatprep.subr.mxu0 0.0
  %86 = vmatpush1.msra.mxu0 0.0
  %87 = vmatprep.subr.mxu0 0.0
  %88 = vmatpush1.msra.mxu0 0.0
  %89 = vmatprep.subr.mxu0 0.0
  %90 = vmatpush1.msra.mxu0 0.0
  %91 = vmatprep.subr.mxu0 0.0
  %92 = vmatpush1.msra.mxu0 0.0
  %93 = vmatprep.subr.mxu0 0.0
  %94 = vmatpush1.msra.mxu0 0.0
  %95 = vmatprep.subr.mxu0 0.0
  %96 = vmatpush1.msra.mxu0 0.0
  %97 = vmatprep.subr.mxu0 0.0
  %98 = vmatpush1.msra.mxu0 0.0
  %99 = vmatprep.subr.mxu0 0.0
  %100 = vmatpush1.msra.mxu0 0.0
  %101 = vmatprep.subr.mxu0 0.0
  %102 = vmatpush1.msra.mxu0 0.0
  %103 = vmatprep.subr.mxu0 0.0
  %104 = vmatpush1.msra.mxu0 0.0
  %105 = vmatprep.subr.mxu0 0.0
  %106 = vmatpush1.msra.mxu0 0.0
  %107 = vmatprep.subr.mxu0 0.0
  %108 = vmatpush1.msra.mxu0 0.0
  %109 = vmatprep.subr.mxu0 0.0
  %110 = vmatpush1.msra.mxu0 0.0
  %111 = vmatprep.subr.mxu0 0.0
  %112 = vmatpush1.msra.mxu0 0.0
  %113 = vmatprep.subr.mxu0 0.0
  %114 = vmatpush1.msra.mxu0 0.0
  %115 = vmatprep.mubr.f32.mxu0 0.0
  %116 = vmatmul.mubr.f32.gmra.mrb[0].mxu0 %v49
  %v117 = vpop.f32.mrb[0].mxu0
  %v118 = vadd.f32 %v46, %v117
  %v119 = vpop.f32.mrb[0].mxu0
  %120 = vdwg.mxu0
  %v121 = vxor.u32 %v118, 2147483648
  %v122 = vmul.f32 %v121, 1.442695
  %v123 = vpow.pop %v122
  %v124 = vadd.f32 %v123, 1.0
  %v125 = vrcp.pop %v124
  %v126 = vmul.f32 1.0, %v125
  %v127 = vmul.f32 %v126, %v21
  %129 = vrot.lane.b32.xlu0 %v127, 96
  %v130 = vpop.permute.xlu0 %129
  %v132 = vadd.f32 %v127, %v130
  %133 = vrot.lane.b32.xlu0 %v127, 64
  %v134 = vpop.permute.xlu0 %133
  %v136 = vadd.f32 %v132, %v134
  %v137 = vxor.u32 %v35, 2147483648
  %v138 = vmul.f32 %v137, 1.442695
  %v139 = vpow.pop %v138
  %v140 = vadd.f32 %v139, 1.0
  %v141 = vrcp.pop %v140
  %v142 = vmul.f32 1.0, %v141
  %v143 = vtanh.pop %v35
  %145 = vrot.lane.b32.xlu0 %v143, 64
  %v146 = vpop.permute.xlu0 %145
  %v148 = vmul.f32 %v142, %v146
  %v149 = vadd.f32 %v148, %v136
  %v150 = vtanh.pop %v149
  %152 = vrot.lane.b32.xlu0 %v150, 32
  %v153 = vpop.permute.xlu0 %152
  %v155 = vmul.f32 %v142, %v153
  %157 = vrot.lane.b32.xlu0 %v155, 96
  %v158 = vpop.permute.xlu0 %157
  %161 = vrot.lane.b32.xlu0 %v149, 32
  %v162 = vpop.permute.xlu0 %161
  %v164 = vsel %vm43, %v158, %v162
  %165 = vst.msk [vmem:[%s5] sm:$0xff] %vm45, %v164
  // Predicated region
  $region22: #{generic_tree_lstm_cell.1} parent=0 // pred_check
    _
  $region23: #{generic_tree_lstm_cell.1} parent=0 // pred_check_branch
    %167 = sbr.rel (0) target = $region25
  $region24: #{generic_tree_lstm_cell.1} parent=0 // pred_region
    _
  $region25: #{generic_tree_lstm_cell.1} parent=0 // pred_fallthru
    _
  // Predicated region
  $region26: #{generic_tree_lstm_cell.1} parent=0 // pred_check
    _
  $region27: #{generic_tree_lstm_cell.1} parent=0 // pred_check_branch
    %169 = sbr.rel (0) target = $region29
  $region28: #{generic_tree_lstm_cell.1} parent=0 // pred_region
    _
  $region29: #{generic_tree_lstm_cell.1} parent=0 // pred_fallthru
    _

</llo_original>
